<compile_context>
chip_gen: v7x
topology: tpu7x:2x2x1
jax: 0.10.0
libtpu: 0.0.40
codegen_flags: <defaults>
</compile_context>

<pallas_src>
import functools

import jax
import jax.numpy as jnp
from jax import lax
from jax.experimental import pallas as pl
from jax.experimental.pallas import tpu as pltpu


def _style_pixel_norm_kernel(x_ref, xn_ref, style_ref, sum_ref, sumsq_ref, *,
                             eps, hw_total):
    """Grid: (batch blocks [parallel], HW tiles [arbitrary, last])."""
    k = pl.program_id(1)

    @pl.when(k == 0)
    def _():
        sum_ref[...] = jnp.zeros_like(sum_ref)
        sumsq_ref[...] = jnp.zeros_like(sumsq_ref)

    x = x_ref[...].astype(jnp.float32)            # (bb, C, hw_t)
    sq = x * x                                    # computed once, reused twice

    # Spatial statistics accumulation (lane-axis reduce -> XLU).
    sum_ref[...] += jnp.sum(x, axis=-1)           # (bb, C)
    sumsq_ref[...] += jnp.sum(sq, axis=-1)        # (bb, C)

    # Pixel norm: per-(b, pixel) channel RMS (sublane reduce -> XLU, rsqrt -> EUP).
    ms = jnp.mean(sq, axis=1, keepdims=True)      # (bb, 1, hw_t)
    inv = lax.rsqrt(ms + eps)
    xn_ref[...] = (x * inv).astype(xn_ref.dtype)  # lane-dense store

    # Finalize mean / std once per batch block (output is resident across k).
    @pl.when(k == pl.num_programs(1) - 1)
    def _():
        inv_hw = jnp.float32(1.0 / hw_total)
        m = sum_ref[...] * inv_hw                             # (bb, C)
        var = sumsq_ref[...] * inv_hw - m * m
        std = jnp.sqrt(jnp.maximum(var, 0.0))                 # clamp rounding noise
        style_ref[:, 0:1, :] = m[:, None, :].astype(style_ref.dtype)
        style_ref[:, 1:2, :] = std[:, None, :].astype(style_ref.dtype)


def _pick_bb(B, block_b):
    # Keep >= 2 batch steps when B > 1 so v7x's two TensorCores both get work.
    cap = max(1, min(block_b, (B + 1) // 2)) if B > 1 else 1
    for bb in range(cap, 0, -1):
        if B % bb == 0:
            return bb
    return 1


def _pick_hw_tile(HW, bb, C, itemsize, budget_bytes):
    # Largest multiple of 128 that divides HW and keeps bb*C*hw_t*itemsize
    # under the per-block budget.  Fall back to the full extent when HW is not
    # a multiple of 128 (small/odd shapes).
    if HW % 128 != 0:
        return HW
    max_t = budget_bytes // max(1, bb * C * itemsize)
    max_t = min(HW, max(128, (max_t // 128) * 128))
    t = max_t
    while HW % t != 0:
        t -= 128
    return t


def style_pixel_norm_2d(x, *, eps=1e-8, block_b=8, block_budget_bytes=8 << 20):
    """x: [B, C, H, W] -> (x_normed [B, C, H, W], style [B, 2*C, 1, 1])."""
    B, C, H, W = x.shape
    HW = H * W
    itemsize = jnp.dtype(x.dtype).itemsize

    # Layout plumbing only: lane-dense spatial slab.
    x2 = x.reshape(B, C, HW)

    bb = _pick_bb(B, block_b)
    hw_t = _pick_hw_tile(HW, bb, C, itemsize, block_budget_bytes)
    grid = (B // bb, HW // hw_t)

    # x block + xn block, double-buffered each, plus small stats/scratch slack.
    block_bytes = bb * C * hw_t * itemsize
    vmem_limit = int(min(64 << 20, max(16 << 20, 4 * block_bytes + (4 << 20))))

    xn, style = pl.pallas_call(
        functools.partial(_style_pixel_norm_kernel,
                          eps=float(eps), hw_total=float(HW)),
        out_shape=(
            jax.ShapeDtypeStruct((B, C, HW), x.dtype),     # normalized x
            jax.ShapeDtypeStruct((B, 2, C), jnp.float32),  # [mean; std], C on lanes
        ),
        grid=grid,
        in_specs=[pl.BlockSpec((bb, C, hw_t), lambda i, k: (i, 0, k))],
        out_specs=(
            pl.BlockSpec((bb, C, hw_t), lambda i, k: (i, 0, k)),
            pl.BlockSpec((bb, 2, C), lambda i, k: (i, 0, 0)),
        ),
        scratch_shapes=[
            pltpu.VMEM((bb, C), jnp.float32),   # running sum(x)
            pltpu.VMEM((bb, C), jnp.float32),   # running sum(x*x)
        ],
        compiler_params=pltpu.CompilerParams(
            dimension_semantics=("parallel", "arbitrary"),
            vmem_limit_bytes=vmem_limit,
        ),
    )(x2)

    x_norm = xn.reshape(B, C, H, W)
    # torch.cat((m, std), dim=1): row 0 holds the C means, row 1 the C stds,
    # so a plain reshape reproduces the concatenation order.  Cast matches the
    # PyTorch module (same dtype as x); drop the cast to keep style in f32.
    style = style.reshape(B, 2 * C, 1, 1).astype(x.dtype)
    return x_norm, style


if __name__ == "__main__":
    batch, channels, spatial = 2, 4, 16
    eps = 1e-8

    key = jax.random.PRNGKey(0)
    x = jax.random.normal(key, (batch, channels, spatial, spatial), dtype=jnp.float32)

    x_norm, style = jax.block_until_ready(style_pixel_norm_2d(x, eps=eps))

    # Pure-JAX reference of the PyTorch forward.
    m_ref = jnp.mean(x, axis=(2, 3), keepdims=True)
    std_ref = jnp.sqrt(jnp.mean((x - m_ref) ** 2, axis=(2, 3), keepdims=True))
    style_ref = jnp.concatenate([m_ref, std_ref], axis=1)
    xn_ref = x * lax.rsqrt(jnp.mean(x * x, axis=1, keepdims=True) + eps)

    assert x_norm.shape == (batch, channels, spatial, spatial)
    assert style.shape == (batch, 2 * channels, 1, 1)
    assert jnp.allclose(x_norm, xn_ref, atol=1e-5, rtol=1e-5)
    assert jnp.allclose(style, style_ref, atol=1e-5, rtol=1e-5)

    print("KERNEL_OK")
</pallas_src>

<mosaic_0001>
module attributes {stable_mosaic.version = 11 : i64} {
  func.func @_style_pixel_norm_kernel(%arg0: i32, %arg1: i32, %arg2: memref<1x4x256xf32, #tpu.memory_space<vmem>>, %arg3: memref<1x4x256xf32, #tpu.memory_space<vmem>>, %arg4: memref<1x2x4xf32, #tpu.memory_space<vmem>>, %arg5: memref<1x4xf32, #tpu.memory_space<vmem>>, %arg6: memref<1x4xf32, #tpu.memory_space<vmem>>) attributes {dimension_semantics = [#tpu.dimension_semantics<parallel>, #tpu.dimension_semantics<arbitrary>], iteration_bounds = array<i64: 2, 1>, scalar_prefetch = 0 : i64, scratch_operands = 2 : i64, tpu.core_type = #tpu.core_type<tc>, window_params = [{transform_indices = @transform_0, window_bounds = array<i64: 1, 4, 256>}, {transform_indices = @transform_1, window_bounds = array<i64: 1, 4, 256>}, {transform_indices = @transform_2, window_bounds = array<i64: 1, 2, 4>}]} {
    %c0_i32 = arith.constant 0 : i32
    %0 = arith.cmpi eq, %arg1, %c0_i32 : i32
    %1 = arith.extui %0 : i1 to i32
    %c0_i32_0 = arith.constant 0 : i32
    %2 = arith.cmpi ne, %1, %c0_i32_0 : i32
    scf.if %2 {
      %cst_20 = arith.constant 0.000000e+00 : f32
      %26 = vector.broadcast %cst_20 : f32 to vector<1x4xf32>
      %c0_21 = arith.constant 0 : index
      %c0_22 = arith.constant 0 : index
      %27 = vector.load %arg5[%c0_21, %c0_22] : memref<1x4xf32, #tpu.memory_space<vmem>>, vector<1x4xf32>
      tpu.vector_store %arg5[%c0_21, %c0_22], %26 {strides = array<i32>} : memref<1x4xf32, #tpu.memory_space<vmem>>, vector<1x4xf32>,
      %cst_23 = arith.constant 0.000000e+00 : f32
      %28 = vector.broadcast %cst_23 : f32 to vector<1x4xf32>
      %c0_24 = arith.constant 0 : index
      %c0_25 = arith.constant 0 : index
      %29 = vector.load %arg6[%c0_24, %c0_25] : memref<1x4xf32, #tpu.memory_space<vmem>>, vector<1x4xf32>
      tpu.vector_store %arg6[%c0_24, %c0_25], %28 {strides = array<i32>} : memref<1x4xf32, #tpu.memory_space<vmem>>, vector<1x4xf32>,
    } else {
    }
    %c0 = arith.constant 0 : index
    %c0_1 = arith.constant 0 : index
    %c0_2 = arith.constant 0 : index
    %3 = vector.load %arg2[%c0, %c0_1, %c0_2] : memref<1x4x256xf32, #tpu.memory_space<vmem>>, vector<1x4x256xf32>
    %4 = arith.mulf %3, %3 : vector<1x4x256xf32>
    %c0_3 = arith.constant 0 : index
    %c0_4 = arith.constant 0 : index
    %5 = vector.load %arg5[%c0_3, %c0_4] : memref<1x4xf32, #tpu.memory_space<vmem>>, vector<1x4xf32>
    %cst = arith.constant dense<0.000000e+00> : vector<1x4xf32>
    %6 = vector.multi_reduction <add>, %3, %cst [2] : vector<1x4x256xf32> to vector<1x4xf32>
    %7 = arith.addf %5, %6 : vector<1x4xf32>
    %c0_5 = arith.constant 0 : index
    %c0_6 = arith.constant 0 : index
    %8 = vector.load %arg5[%c0_5, %c0_6] : memref<1x4xf32, #tpu.memory_space<vmem>>, vector<1x4xf32>
    tpu.vector_store %arg5[%c0_5, %c0_6], %7 {strides = array<i32>} : memref<1x4xf32, #tpu.memory_space<vmem>>, vector<1x4xf32>,
    %c0_7 = arith.constant 0 : index
    %c0_8 = arith.constant 0 : index
    %9 = vector.load %arg6[%c0_7, %c0_8] : memref<1x4xf32, #tpu.memory_space<vmem>>, vector<1x4xf32>
    %cst_9 = arith.constant dense<0.000000e+00> : vector<1x4xf32>
    %10 = vector.multi_reduction <add>, %4, %cst_9 [2] : vector<1x4x256xf32> to vector<1x4xf32>
    %11 = arith.addf %9, %10 : vector<1x4xf32>
    %c0_10 = arith.constant 0 : index
    %c0_11 = arith.constant 0 : index
    %12 = vector.load %arg6[%c0_10, %c0_11] : memref<1x4xf32, #tpu.memory_space<vmem>>, vector<1x4xf32>
    tpu.vector_store %arg6[%c0_10, %c0_11], %11 {strides = array<i32>} : memref<1x4xf32, #tpu.memory_space<vmem>>, vector<1x4xf32>,
    %cst_12 = arith.constant dense<0.000000e+00> : vector<1x256xf32>
    %13 = vector.multi_reduction <add>, %4, %cst_12 [1] : vector<1x4x256xf32> to vector<1x256xf32>
    %14 = vector.shape_cast %13 : vector<1x256xf32> to vector<1x1x256xf32>
    %cst_13 = arith.constant 4.000000e+00 : f32
    %15 = vector.broadcast %cst_13 : f32 to vector<1x1x256xf32>
    %16 = arith.divf %14, %15 : vector<1x1x256xf32>
    %cst_14 = arith.constant 9.99999993E-9 : f32
    %17 = vector.broadcast %cst_14 : f32 to vector<1x1x256xf32>
    %18 = arith.addf %16, %17 : vector<1x1x256xf32>
    %19 = math.rsqrt %18 : vector<1x1x256xf32>
    %20 = vector.broadcast %19 : vector<1x1x256xf32> to vector<1x4x256xf32>
    %21 = arith.mulf %3, %20 : vector<1x4x256xf32>
    %c0_15 = arith.constant 0 : index
    %c0_16 = arith.constant 0 : index
    %c0_17 = arith.constant 0 : index
    %22 = vector.load %arg3[%c0_15, %c0_16, %c0_17] : memref<1x4x256xf32, #tpu.memory_space<vmem>>, vector<1x4x256xf32>
    tpu.vector_store %arg3[%c0_15, %c0_16, %c0_17], %21 {strides = array<i32>} : memref<1x4x256xf32, #tpu.memory_space<vmem>>, vector<1x4x256xf32>,
    %c0_i32_18 = arith.constant 0 : i32
    %23 = arith.cmpi eq, %arg1, %c0_i32_18 : i32
    %24 = arith.extui %23 : i1 to i32
    %c0_i32_19 = arith.constant 0 : i32
    %25 = arith.cmpi ne, %24, %c0_i32_19 : i32
    scf.if %25 {
      %c0_20 = arith.constant 0 : index
      %c0_21 = arith.constant 0 : index
      %26 = vector.load %arg5[%c0_20, %c0_21] : memref<1x4xf32, #tpu.memory_space<vmem>>, vector<1x4xf32>
      %cst_22 = arith.constant 3.906250e-03 : f32
      %27 = vector.broadcast %cst_22 : f32 to vector<1x4xf32>
      %28 = arith.mulf %26, %27 : vector<1x4xf32>
      %c0_23 = arith.constant 0 : index
      %c0_24 = arith.constant 0 : index
      %29 = vector.load %arg6[%c0_23, %c0_24] : memref<1x4xf32, #tpu.memory_space<vmem>>, vector<1x4xf32>
      %cst_25 = arith.constant 3.906250e-03 : f32
      %30 = vector.broadcast %cst_25 : f32 to vector<1x4xf32>
      %31 = arith.mulf %29, %30 : vector<1x4xf32>
      %32 = arith.mulf %28, %28 : vector<1x4xf32>
      %33 = arith.subf %31, %32 : vector<1x4xf32>
      %cst_26 = arith.constant 0.000000e+00 : f32
      %34 = vector.broadcast %cst_26 : f32 to vector<1x4xf32>
      %35 = arith.maximumf %33, %34 : vector<1x4xf32>
      %36 = math.sqrt %35 : vector<1x4xf32>
      %37 = vector.shape_cast %28 : vector<1x4xf32> to vector<1x1x4xf32>
      %c0_27 = arith.constant 0 : index
      %c0_28 = arith.constant 0 : index
      %c0_29 = arith.constant 0 : index
      %38 = vector.load %arg4[%c0_27, %c0_28, %c0_29] : memref<1x2x4xf32, #tpu.memory_space<vmem>>, vector<1x1x4xf32>
      tpu.vector_store %arg4[%c0_27, %c0_28, %c0_29], %37 {strides = array<i32>} : memref<1x2x4xf32, #tpu.memory_space<vmem>>, vector<1x1x4xf32>,
      %39 = vector.shape_cast %36 : vector<1x4xf32> to vector<1x1x4xf32>
      %c0_30 = arith.constant 0 : index
      %c1 = arith.constant 1 : index
      %c0_31 = arith.constant 0 : index
      %40 = vector.load %arg4[%c0_30, %c1, %c0_31] : memref<1x2x4xf32, #tpu.memory_space<vmem>>, vector<1x1x4xf32>
      tpu.vector_store %arg4[%c0_30, %c1, %c0_31], %39 {strides = array<i32>} : memref<1x2x4xf32, #tpu.memory_space<vmem>>, vector<1x1x4xf32>,
    } else {
    }
    return
  }
  func.func @transform_0(%arg0: i32, %arg1: i32) -> (i32, i32, i32) {
    %c0_i32 = arith.constant 0 : i32
    %c0_i32_0 = arith.constant 0 : i32
    return %arg0, %c0_i32, %arg1 : i32, i32, i32
  }
  func.func @transform_1(%arg0: i32, %arg1: i32) -> (i32, i32, i32) {
    %c0_i32 = arith.constant 0 : i32
    %c0_i32_0 = arith.constant 0 : i32
    return %arg0, %c0_i32, %arg1 : i32, i32, i32
  }
  func.func @transform_2(%arg0: i32, %arg1: i32) -> (i32, i32, i32) {
    %c0_i32 = arith.constant 0 : i32
    %c0_i32_0 = arith.constant 0 : i32
    %c0_i32_1 = arith.constant 0 : i32
    return %arg0, %c0_i32, %c0_i32_0 : i32, i32, i32
  }
}

</mosaic_0001>

<llo_original>
// kernel: tpu_custom_call.1
$region0: #{tpu_custom_call.1}
  #allocation0 [shape = 'u32[]', space=smem, size = 0x4, offset = 0x4, fixed_abs, tag = 'smem constant byte address 0x4 - core index']
  #allocation1 [shape = 'u32[144,128]{1,0:T(1,128)}', space=vmem, size = 0x12000, scoped, tag = 'internal scratch']
  #allocation2 [shape = 'f32[1,4]{1,0:T(1,128)}', space=vmem, size = 0x200, scoped, tag = 'scratch operand']
  #allocation3 [shape = 'f32[1,4]{1,0:T(1,128)}', space=vmem, size = 0x200, scoped, tag = 'scratch operand']
  %s0 = inlined_call_operand.hbm [shape: f32[2,4,256], index: 0, kind: input, shape index: {}]
  %s1 = inlined_call_operand.hbm [shape: f32[2,4,256], index: 1, kind: output, shape index: {0}]
  %s2 = inlined_call_operand.hbm [shape: f32[2,2,4], index: 2, kind: output, shape index: {1}]
  %3 = xla_tuple %s1, %s2
  %s4 = sld [smem:[#allocation0]]
  $region57: #{tpu_custom_call.1} parent=0
    _
  %s6 = ssub.s32 1, %s4
  %s7 = scalar_select 0, %s6, %s4
  $region1: #{tpu_custom_call.1} parent=0
    #allocation4 [shape = 'u8[8192]{0}', space=vmem, size = 0x2000, scoped, tag = 'input window, operand 0']
    #allocation5 [shape = 's32[2]{0}', space=sflag, size = 0x8, scoped, tag = 'scoped memory for tpu_custom_call.1']
    #allocation6 [shape = 's32[2]{0}', space=sflag, size = 0x8, scoped, tag = 'scoped memory for tpu_custom_call.1']
    #allocation7 [shape = 'u8[8192]{0}', space=vmem, size = 0x2000, scoped, tag = 'output window, operand 0']
    #allocation8 [shape = 'u8[2048]{0}', space=vmem, size = 0x800, scoped, tag = 'output window, operand 1']
    #allocation9 [shape = 's32[2]{0}', space=sflag, size = 0x8, scoped, tag = 'scoped memory for tpu_custom_call.1']
    %8 = vsyncpa [#allocation5], 0
    %s9 = scalar_lea.sflag [#allocation5], 1
    %10 = vsyncpa %s9, 0
    %11 = vsyncpa [#allocation6], 0
    %s12 = scalar_lea.sflag [#allocation6], 1
    %13 = vsyncpa %s12, 0
    %14 = vsyncpa [#allocation9], 0
    %s15 = scalar_lea.sflag [#allocation9], 1
    %16 = vsyncpa %s15, 0
    loop: start=0, step=1, limit=4
    $region2: #{tpu_custom_call.1} parent=1 // loop_pre_header
      _
    $region3: #{tpu_custom_call.1} parent=1 // loop_header
      %s18 = sphi 0, %s22
      %p19 = scmp.ge.s32.totalorder %s18, 4
      %s25 = sphi 0, %s37
      %s26 = sphi 0, %s33
      %s27 = sphi 0, %s25
      %s28 = sphi 0, %s26
      %s29 = sphi 0, %s27
      %s30 = sphi 0, %s28
      %s42 = sphi 0, %s44
      %s45 = sphi 0, %s42
      %s46 = sphi 0, %s45
      %s62 = sphi 0, %s46
      %s70 = sphi 0, %s72
      %s73 = sphi 0, %s70
      %s74 = sphi 0, %s73
      %s90 = sphi 0, %s74
      %s96 = sphi 0, %s98
      %s99 = sphi 0, %s96
      %s100 = sphi 0, %s99
      %s116 = sphi 0, %s100
    $region4: #{tpu_custom_call.1} parent=1 // loop_header_branch
      %21 = sbr.rel (%p19) target = $region8
    $region5: #{tpu_custom_call.1} parent=1 // loop_body
      %s23 = ssub.s32 %s18, 1
      %s24 = ssub.s32 %s18, 2
      %s31 = sadd.s32 1, %s26
      %p32 = scmp.ge.s32.totalorder %s31, 1
      %s33 = scalar_select %p32, 0, %s31
      %s34 = sadd.s32 1, %s25
      %s35 = scalar_select %p32, %s34, %s25
      %p36 = scmp.ge.s32.totalorder %s35, 2
      %s37 = scalar_select %p36, 0, %s35
      %s38 = ssub.s32 %s25, %s37
      %s39 = ssub.s32 %s26, %s33
      %s40 = sor.u32 %s38, %s39
      %p41 = scmp.eq.s32.totalorder %s40, 0
      %s43 = sadd.s32 %s42, 1
      %s44 = scalar_select %p41, %s42, %s43
      %p47 = pneg %p41
      %p48 = scmp.eq.s32.totalorder %s18, 1
      %p49 = por %p47, %p48
      %p50 = scmp.ne.s32.totalorder %s42, %s45
      %p51 = scmp.eq.s32.totalorder %s18, 0
      %p52 = por %p50, %p51
      %p53 = scmp.ne.s32.totalorder %s42, %s45
      %p54 = scmp.eq.s32.totalorder %s23, 1
      %p55 = por %p53, %p54
      %p56 = scmp.ne.s32.totalorder %s45, %s46
      %p57 = scmp.eq.s32.totalorder %s23, 0
      %p58 = por %p56, %p57
      %p59 = scmp.ne.s32.totalorder %s45, %s46
      %p60 = scmp.eq.s32.totalorder %s24, 1
      %p61 = por %p59, %p60
      %p63 = scmp.ne.s32.totalorder %s46, %s62
      %p64 = scmp.eq.s32.totalorder %s24, 0
      %p65 = por %p63, %p64
      %s66 = ssub.s32 %s25, %s37
      %s67 = ssub.s32 %s26, %s33
      %s68 = sor.u32 %s66, %s67
      %p69 = scmp.eq.s32.totalorder %s68, 0
      %s71 = sadd.s32 %s70, 1
      %s72 = scalar_select %p69, %s70, %s71
      %p75 = pneg %p69
      %p76 = scmp.eq.s32.totalorder %s18, 1
      %p77 = por %p75, %p76
      %p78 = scmp.ne.s32.totalorder %s70, %s73
      %p79 = scmp.eq.s32.totalorder %s18, 0
      %p80 = por %p78, %p79
      %p81 = scmp.ne.s32.totalorder %s70, %s73
      %p82 = scmp.eq.s32.totalorder %s23, 1
      %p83 = por %p81, %p82
      %p84 = scmp.ne.s32.totalorder %s73, %s74
      %p85 = scmp.eq.s32.totalorder %s23, 0
      %p86 = por %p84, %p85
      %p87 = scmp.ne.s32.totalorder %s73, %s74
      %p88 = scmp.eq.s32.totalorder %s24, 1
      %p89 = por %p87, %p88
      %p91 = scmp.ne.s32.totalorder %s74, %s90
      %p92 = scmp.eq.s32.totalorder %s24, 0
      %p93 = por %p91, %p92
      %s94 = ssub.s32 %s25, %s37
      %p95 = scmp.eq.s32.totalorder %s94, 0
      %s97 = sadd.s32 %s96, 1
      %s98 = scalar_select %p95, %s96, %s97
      %p101 = pneg %p95
      %p102 = scmp.eq.s32.totalorder %s18, 1
      %p103 = por %p101, %p102
      %p104 = scmp.ne.s32.totalorder %s96, %s99
      %p105 = scmp.eq.s32.totalorder %s18, 0
      %p106 = por %p104, %p105
      %p107 = scmp.ne.s32.totalorder %s96, %s99
      %p108 = scmp.eq.s32.totalorder %s23, 1
      %p109 = por %p107, %p108
      %p110 = scmp.ne.s32.totalorder %s99, %s100
      %p111 = scmp.eq.s32.totalorder %s23, 0
      %p112 = por %p110, %p111
      %p113 = scmp.ne.s32.totalorder %s99, %s100
      %p114 = scmp.eq.s32.totalorder %s24, 1
      %p115 = por %p113, %p114
      %p117 = scmp.ne.s32.totalorder %s100, %s116
      %p118 = scmp.eq.s32.totalorder %s24, 0
      %p119 = por %p117, %p118
      %p120 = scmp.le.s32.totalorder 1, %s18
      %p121 = scmp.lt.s32.totalorder %s18, 3
      %p122 = pnand %p120, %p121
      %p123 = pneg %p122
      // Predicated region
      $region9: #{tpu_custom_call.1} parent=5 // pred_check
        _
      $region10: #{tpu_custom_call.1} parent=5 // pred_check_branch
        %125 = sbr.rel (%p122) target = $region12
      $region11: #{tpu_custom_call.1} parent=5 // pred_region
        %s126 = ssub.s32 %s18, 1
      $region12: #{tpu_custom_call.1} parent=5 // pred_fallthru
        _
      %p127 = scmp.lt.s32.totalorder %s18, 2
      // Predicated region
      $region13: #{tpu_custom_call.1} parent=5 // pred_check
        %p128 = pneg %p127
      $region14: #{tpu_custom_call.1} parent=5 // pred_check_branch
        %130 = sbr.rel (%p128) target = $region16
      $region15: #{tpu_custom_call.1} parent=5 // pred_region
        // Predicated region
        $region17: #{tpu_custom_call.1} parent=15 // pred_check
          %p131 = pneg %p52
        $region18: #{tpu_custom_call.1} parent=15 // pred_check_branch
          %133 = sbr.rel (%p131) target = $region20
        $region19: #{tpu_custom_call.1} parent=15 // pred_region
          %s134 = sand.u32 %s42, 1
          %s135 = scalar_lea.sflag [#allocation5], %s134
          %s136 = sand.u32 %s42, 1
          %s137 = smul.addr %s136, 8
          %s138 = scalar_lea.vmem [#allocation4], %s137
          %s139 = smul.u32 2, %s26
          %s141 = ssub.s32 128, 128
          %142 = vsyncadd %s135, %s141
          %s143 = smul.addr %s25, 2
          %s144 = sadd.s32 %s139, %s143
          %s145 = smul.addr %s144, 64
          %s146 = scalar_lea.hbm %s0, %s145
          %s148 = sshll.u32 %s138, 4
          %s149 = int_to_ptr.vmem [resolvable:$true] %s148
          %151 = dma.hbm_to_vmem [thread:$0]  %s146, 128, %s149, %s135
        $region20: #{tpu_custom_call.1} parent=15 // pred_fallthru
          _
      $region16: #{tpu_custom_call.1} parent=5 // pred_fallthru
        _
      %p152 = scmp.le.s32.totalorder 1, %s18
      %p153 = scmp.lt.s32.totalorder %s18, 3
      %p154 = pnand %p152, %p153
      %p155 = pneg %p154
      // Predicated region
      $region21: #{tpu_custom_call.1} parent=5 // pred_check
        _
      $region22: #{tpu_custom_call.1} parent=5 // pred_check_branch
        %157 = sbr.rel (%p154) target = $region24
      $region23: #{tpu_custom_call.1} parent=5 // pred_region
        %s158 = ssub.s32 %s18, 1
        %s159 = sand.u32 %s45, 1
        %s160 = scalar_lea.sflag [#allocation5], %s159
        %s161 = sand.u32 %s45, 1
        %s162 = smul.addr %s161, 8
        %s163 = scalar_lea.vmem [#allocation4], %s162
        // Predicated region
        $region25: #{tpu_custom_call.1} parent=23 // pred_check
          %p164 = pneg %p58
        $region26: #{tpu_custom_call.1} parent=23 // pred_check_branch
          %166 = sbr.rel (%p164) target = $region28
        $region27: #{tpu_custom_call.1} parent=23 // pred_region
          %167 = dma.done %s160, 128
        $region28: #{tpu_custom_call.1} parent=23 // pred_fallthru
          _
        %s168 = sand.u32 %s45, 1
        %s169 = scalar_lea.sflag [#allocation5], %s168
        %s170 = sand.u32 %s45, 1
        %s171 = smul.addr %s170, 8
        %s172 = scalar_lea.vmem [#allocation4], %s171
        %p173 = pneg %p58
        %p174 = pneg %p55
        %p175 = pneg %p86
        %p176 = pneg %p83
        %s177 = sand.u32 %s73, 1
        %s178 = scalar_lea.sflag [#allocation6], %s177
        %s179 = sand.u32 %s73, 1
        %s180 = smul.addr %s179, 8
        %s181 = scalar_lea.vmem [#allocation7], %s180
        %p182 = pneg %p112
        %p183 = pneg %p109
        %s184 = sand.u32 %s99, 1
        %s185 = scalar_lea.sflag [#allocation9], %s184
        %s186 = sand.u32 %s99, 1
        %s187 = smul.addr %s186, 2
        %s188 = scalar_lea.vmem [#allocation8], %s187
        %s189 = smul.u32 2, %s28
        %s190 = smul.u32 2, %s28
        %p191 = scmp.eq.s32.totalorder %s28, 0
        // Predicated region
        $region29: #{tpu_custom_call.1} parent=23 // pred_check
          %p192 = pneg %p191
        $region30: #{tpu_custom_call.1} parent=23 // pred_check_branch
          %194 = sbr.rel (%p192) target = $region32
        $region31: #{tpu_custom_call.1} parent=23 // pred_region
          %vm195 = vcmask 24576
          %196 = vst.msk [vmem:[#allocation2] sm:$0x1] %vm195, 0.0
          %197 = vst.msk [vmem:[#allocation3] sm:$0x1] %vm195, 0.0
        $region32: #{tpu_custom_call.1} parent=23 // pred_fallthru
          _
        %v198 = vld [vmem:[%s163] sm:$0xff]
        %v199 = vmul.f32 %v198, %v198
        %v200 = vld [vmem:[#allocation2] sm:$0x1]
        %v202 = vcombine.high %v198, %v198
        %vm204 = vcmask 1043456
        %v205 = vsel %vm204, %v198, 0.0
        %v206 = vsel %vm204, %v202, 0.0
        %v207 = vadd.f32 %v205, %v206
        %208 = vadd.xlane.f32.xlu0 %v207
        %v209 = vpop.xlane.xlu0 %208
        %v211 = vlaneseq
        %v212 = vshrl.u32 %v211, 7
        %v213 = vsub.s32 0, %v212
        %v214 = vrot.slane %v209, %v213
        %v215 = vlaneseq
        %v216 = vshrl.u32 %v215, 7
        %v217 = vsub.s32 1, %v216
        %v218 = vrot.slane %v209, %v217
        %v219 = vlaneseq
        %v220 = vshrl.u32 %v219, 7
        %v221 = vsub.s32 2, %v220
        %v222 = vrot.slane %v209, %v221
        %v223 = vlaneseq
        %v224 = vshrl.u32 %v223, 7
        %v225 = vsub.s32 3, %v224
        %v226 = vrot.slane %v209, %v225
        %v227 = vcombine.low %v214, %v218
        %v228 = vcombine.low %v222, %v226
        %v230 = vunpack.c.l.s4 1966171168
        %v231 = vunpack.c.0.s8 %v230
        %v232 = vlaneseq
        %v233 = vshrl.u32 %v232, 7
        %v234 = vsub.s32 %v231, %v233
        %v235 = vrot.slane %v227, %v234
        %v237 = vunpack.c.l.s4 1966171168
        %v238 = vunpack.c.0.s8 %v237
        %v239 = vlaneseq
        %v240 = vshrl.u32 %v239, 7
        %v241 = vsub.s32 %v238, %v240
        %v242 = vrot.slane %v228, %v241
        %v243 = vcombine.low %v235, %v242
        %v245 = vunpack.c.l.s4 1966171168
        %v246 = vunpack.c.0.s8 %v245
        %v247 = vlaneseq
        %v248 = vshrl.u32 %v247, 7
        %v249 = vsub.s32 %v246, %v248
        %v250 = vrot.slane %v243, %v249
        %251 = vset.pattern.permute.xlu0 0
        %252 = vperm.xlu0 %251, %v250
        %v253 = vpop.permute.xlu0 %252
        %v254 = vlaneseq
        %v255 = vand.u32 %v254, 127
        %v256 = vlaneseq
        %v257 = vshrl.u32 %v256, 7
        %v258 = vsub.s32 %v255, %v257
        %v259 = vrot.slane %v253, %v258
        %v261 = vunpack.c.l.s4 1966171168
        %v262 = vunpack.c.0.s8 %v261
        %v263 = vlaneseq
        %v264 = vshrl.u32 %v263, 7
        %v265 = vsub.s32 %v262, %v264
        %v266 = vrot.slane %v259, %v265
        %v268 = vunpack.c.l.s4 1966171168
        %v269 = vunpack.c.0.s8 %v268
        %v270 = vlaneseq
        %v271 = vshrl.u32 %v270, 7
        %v272 = vsub.s32 %v269, %v271
        %v273 = vrot.slane %v266, %v272
        %v275 = vadd.f32 %v200, %v273
        %vm276 = vcmask 24576
        %277 = vst.msk [vmem:[#allocation2] sm:$0x1] %vm276, %v275
        %v278 = vld [vmem:[#allocation3] sm:$0x1]
        %v280 = vcombine.high %v199, %v199
        %v282 = vsel %vm204, %v199, 0.0
        %v283 = vsel %vm204, %v280, 0.0
        %v284 = vadd.f32 %v282, %v283
        %285 = vadd.xlane.f32.xlu0 %v284
        %v286 = vpop.xlane.xlu0 %285
        %v288 = vlaneseq
        %v289 = vshrl.u32 %v288, 7
        %v290 = vsub.s32 0, %v289
        %v291 = vrot.slane %v286, %v290
        %v292 = vlaneseq
        %v293 = vshrl.u32 %v292, 7
        %v294 = vsub.s32 1, %v293
        %v295 = vrot.slane %v286, %v294
        %v296 = vlaneseq
        %v297 = vshrl.u32 %v296, 7
        %v298 = vsub.s32 2, %v297
        %v299 = vrot.slane %v286, %v298
        %v300 = vlaneseq
        %v301 = vshrl.u32 %v300, 7
        %v302 = vsub.s32 3, %v301
        %v303 = vrot.slane %v286, %v302
        %v304 = vcombine.low %v291, %v295
        %v305 = vcombine.low %v299, %v303
        %v307 = vunpack.c.l.s4 1966171168
        %v308 = vunpack.c.0.s8 %v307
        %v309 = vlaneseq
        %v310 = vshrl.u32 %v309, 7
        %v311 = vsub.s32 %v308, %v310
        %v312 = vrot.slane %v304, %v311
        %v314 = vunpack.c.l.s4 1966171168
        %v315 = vunpack.c.0.s8 %v314
        %v316 = vlaneseq
        %v317 = vshrl.u32 %v316, 7
        %v318 = vsub.s32 %v315, %v317
        %v319 = vrot.slane %v305, %v318
        %v320 = vcombine.low %v312, %v319
        %v322 = vunpack.c.l.s4 1966171168
        %v323 = vunpack.c.0.s8 %v322
        %v324 = vlaneseq
        %v325 = vshrl.u32 %v324, 7
        %v326 = vsub.s32 %v323, %v325
        %v327 = vrot.slane %v320, %v326
        %328 = vset.pattern.permute.xlu0 0
        %329 = vperm.xlu0 %328, %v327
        %v330 = vpop.permute.xlu0 %329
        %v331 = vlaneseq
        %v332 = vshrl.u32 %v331, 7
        %v333 = vsub.s32 %v255, %v332
        %v334 = vrot.slane %v330, %v333
        %v336 = vunpack.c.l.s4 1966171168
        %v337 = vunpack.c.0.s8 %v336
        %v338 = vlaneseq
        %v339 = vshrl.u32 %v338, 7
        %v340 = vsub.s32 %v337, %v339
        %v341 = vrot.slane %v334, %v340
        %v343 = vunpack.c.l.s4 1966171168
        %v344 = vunpack.c.0.s8 %v343
        %v345 = vlaneseq
        %v346 = vshrl.u32 %v345, 7
        %v347 = vsub.s32 %v344, %v346
        %v348 = vrot.slane %v341, %v347
        %v350 = vadd.f32 %v278, %v348
        %351 = vst.msk [vmem:[#allocation3] sm:$0x1] %vm276, %v350
        %v352 = vrot.slane %v282, 4
        %v353 = vadd.f32 %v282, %v352
        %v354 = vrot.slane %v353, 2
        %v355 = vadd.f32 %v353, %v354
        %v356 = vrot.slane %v355, 1
        %v357 = vadd.f32 %v355, %v356
        %v358 = vrot.slane %v283, 4
        %v359 = vadd.f32 %v283, %v358
        %v360 = vrot.slane %v359, 2
        %v361 = vadd.f32 %v359, %v360
        %v362 = vrot.slane %v361, 1
        %v363 = vadd.f32 %v361, %v362
        %v364 = vrcp.pop 4.0
        %v365 = vmul.f32 %v357, %v364
        %v366 = vmul.f32 %v363, %v364
        %v367 = vadd.f32 %v365, 1e-08
        %v368 = vadd.f32 %v366, 1e-08
        %v369 = vrsqrt.pop %v367
        %v370 = vrsqrt.pop %v368
        %v373 = vcombine.low %v369, %v370
        %v375 = vmul.f32 %v198, %v373
        %376 = vst [vmem:[%s181] sm:$0xff] %v375
        // Predicated region
        $region33: #{tpu_custom_call.1} parent=23 // pred_check
          %p377 = pneg %p191
        $region34: #{tpu_custom_call.1} parent=23 // pred_check_branch
          %379 = sbr.rel (%p377) target = $region36
        $region35: #{tpu_custom_call.1} parent=23 // pred_region
          %v380 = vld [vmem:[#allocation2] sm:$0x1]
          %v381 = vmul.f32 %v380, 0.00390625
          %v382 = vld [vmem:[#allocation3] sm:$0x1]
          %v383 = vmul.f32 %v382, 0.00390625
          %v384 = vmul.f32 %v381, %v381
          %v385 = vsub.f32 %v383, %v384
          %v386 = vmax.f32 %v385, 0.0
          %v387 = vrsqrt.pop %v386
          %v388 = vmul.f32 %v386, %v387
          %vm389 = vcmp.eq.f32.partialorder %v386, inf
          %v390 = vsel %vm389, %v386, %v388
          %vm391 = vcmp.eq.f32.partialorder %v386, 0.0
          %v392 = vand.u32 %v386, 2147483648
          %v393 = vsel %vm391, %v392, %v390
          %394 = vst.msk [vmem:[%s188] sm:$0x1] %vm276, %v381
          %395 = vst.msk [vmem:[%s188 + $0x1] sm:$0x1] %vm276, %v393
        $region36: #{tpu_custom_call.1} parent=23 // pred_fallthru
          _
        %s396 = sand.u32 %s73, 1
        %s397 = scalar_lea.sflag [#allocation6], %s396
        %s398 = sand.u32 %s73, 1
        %s399 = smul.addr %s398, 8
        %s400 = scalar_lea.vmem [#allocation7], %s399
        %s401 = sand.u32 %s99, 1
        %s402 = scalar_lea.sflag [#allocation9], %s401
        %s403 = sand.u32 %s99, 1
        %s404 = smul.addr %s403, 2
        %s405 = scalar_lea.vmem [#allocation8], %s404
        // Predicated region
        $region37: #{tpu_custom_call.1} parent=23 // pred_check
          %p406 = pneg %p83
        $region38: #{tpu_custom_call.1} parent=23 // pred_check_branch
          %408 = sbr.rel (%p406) target = $region40
        $region39: #{tpu_custom_call.1} parent=23 // pred_region
          %s409 = smul.u32 2, %s28
          %s411 = ssub.s32 128, 128
          %412 = vsyncadd %s397, %s411
          %s413 = smul.addr %s27, 2
          %s414 = sadd.s32 %s409, %s413
          %s415 = smul.addr %s414, 64
          %s416 = scalar_lea.hbm %s1, %s415
          %s418 = sshll.u32 %s400, 4
          %s419 = int_to_ptr.vmem [resolvable:$true] %s418
          %421 = dma.vmem_to_hbm [thread:$0]  %s419, 128, %s416, %s397
        $region40: #{tpu_custom_call.1} parent=23 // pred_fallthru
          _
        // Predicated region
        $region41: #{tpu_custom_call.1} parent=23 // pred_check
          %p422 = pneg %p109
        $region42: #{tpu_custom_call.1} parent=23 // pred_check_branch
          %424 = sbr.rel (%p422) target = $region44
        $region43: #{tpu_custom_call.1} parent=23 // pred_region
          %s426 = ssub.s32 32, 32
          %427 = vsyncadd %s402, %s426
          %s428 = smul.addr %s27, 32
          %s429 = scalar_lea.hbm %s2, %s428
          %s431 = sshll.u32 %s405, 4
          %s432 = int_to_ptr.vmem [resolvable:$true] %s431
          %434 = dma.vmem_to_hbm [thread:$0]  %s432, 32, %s429, %s402
        $region44: #{tpu_custom_call.1} parent=23 // pred_fallthru
          _
      $region24: #{tpu_custom_call.1} parent=5 // pred_fallthru
        _
      %p435 = scmp.le.s32.totalorder 2, %s18
      // Predicated region
      $region45: #{tpu_custom_call.1} parent=5 // pred_check
        %p436 = pneg %p435
      $region46: #{tpu_custom_call.1} parent=5 // pred_check_branch
        %438 = sbr.rel (%p436) target = $region48
      $region47: #{tpu_custom_call.1} parent=5 // pred_region
        %s439 = ssub.s32 %s18, 2
        // Predicated region
        $region49: #{tpu_custom_call.1} parent=47 // pred_check
          %p440 = pneg %p89
        $region50: #{tpu_custom_call.1} parent=47 // pred_check_branch
          %442 = sbr.rel (%p440) target = $region52
        $region51: #{tpu_custom_call.1} parent=47 // pred_region
          %s443 = sand.u32 %s74, 1
          %s444 = scalar_lea.sflag [#allocation6], %s443
          %s445 = sand.u32 %s74, 1
          %s446 = smul.addr %s445, 8
          %s447 = scalar_lea.vmem [#allocation7], %s446
          %448 = dma.done %s444, 128
        $region52: #{tpu_custom_call.1} parent=47 // pred_fallthru
          _
        // Predicated region
        $region53: #{tpu_custom_call.1} parent=47 // pred_check
          %p449 = pneg %p115
        $region54: #{tpu_custom_call.1} parent=47 // pred_check_branch
          %451 = sbr.rel (%p449) target = $region56
        $region55: #{tpu_custom_call.1} parent=47 // pred_region
          %s452 = sand.u32 %s100, 1
          %s453 = scalar_lea.sflag [#allocation9], %s452
          %s454 = sand.u32 %s100, 1
          %s455 = smul.addr %s454, 2
          %s456 = scalar_lea.vmem [#allocation8], %s455
          %457 = dma.done %s453, 32
        $region56: #{tpu_custom_call.1} parent=47 // pred_fallthru
          _
      $region48: #{tpu_custom_call.1} parent=5 // pred_fallthru
        _
    $region6: #{tpu_custom_call.1} parent=1 // loop_footer
      %s22 = sadd.s32 1, %s18
    $region7: #{tpu_custom_call.1} parent=1 // loop_footer_branch
      %17 = sbr.rel target = $region3
    $region8: #{tpu_custom_call.1} parent=1 // loop_exit
      _
    %458 = vsyncpa [#allocation5], 1
    %s459 = scalar_lea.sflag [#allocation5], 1
    %460 = vsyncpa %s459, 1
    %461 = vsyncpa [#allocation6], 1
    %s462 = scalar_lea.sflag [#allocation6], 1
    %463 = vsyncpa %s462, 1
    %464 = vsyncpa [#allocation9], 1
    %s465 = scalar_lea.sflag [#allocation9], 1
    %466 = vsyncpa %s465, 1

</llo_original>
